<compile_context>
chip_gen: v7x
topology: tpu7x:2x2x1
jax: 0.10.0
libtpu: 0.0.40
codegen_flags: <defaults>
</compile_context>

<pallas_src>
import jax
import jax.numpy as jnp
from jax.experimental import pallas as pl
from jax.experimental.pallas import tpu as pltpu


def _round_up(x, m):
    return (x + m - 1) // m * m


def _embeddings_kernel(p_ref, w_ref, pos_ref, out_ref):
    # p_ref:   (1, TM, K)  bf16 patch rows for one (batch, N-tile)
    # w_ref:   (K, TH)     bf16 flattened conv weight slice
    # pos_ref: (TM, TH)    f32 position embeddings with conv bias folded in
    # out_ref: (1, TM, TH) f32
    y = jnp.dot(p_ref[0], w_ref[...], preferred_element_type=jnp.float32)  # (TM, TH)
    out_ref[0] = (y + pos_ref[...]).astype(out_ref.dtype)


def embeddings_forward(x_nchw, conv_w, conv_b, pos_emb, patch_size):
    """x_nchw: (B, C, H, W); conv_w: (hidden, C, ph, pw); conv_b: (hidden,);
    pos_emb: (1, n_patches, hidden). Returns (embeddings, features=None)."""
    B, C, H, W = x_nchw.shape
    ph, pw = patch_size
    gh, gw = H // ph, W // pw
    n_patches = gh * gw
    hidden = conv_w.shape[0]
    K = C * ph * pw

    # --- glue (bf16): non-overlapping patches in conv-compatible (C,ph,pw) order ---
    xb = x_nchw.astype(jnp.bfloat16)
    patches = xb.reshape(B, C, gh, ph, gw, pw)
    patches = patches.transpose(0, 2, 4, 1, 3, 5)            # (B, gh, gw, C, ph, pw)
    patches = patches.reshape(B, n_patches, K)                # bf16 (B, N, K)

    # Fold conv bias into the position embedding (drops one stream + one add).
    pos_pb = (pos_emb[0].astype(jnp.float32)
              + conv_b.astype(jnp.float32)[None, :])          # (N, hidden) f32

    # bf16 weights in (K, hidden) layout for the MXU.
    w_mat = conv_w.astype(jnp.bfloat16).reshape(hidden, K).T  # (K, hidden)

    # --- tiling: lane-dense hidden (multiple of 128), bounded N tiles ---
    H_pad = _round_up(hidden, 128)
    if H_pad <= 1024:
        TH = H_pad
    else:
        H_pad = _round_up(hidden, 512)
        TH = 512

    if n_patches <= 512:
        TM, N_pad = n_patches, n_patches      # full-extent block (no (8) constraint)
    else:
        TM = 256
        N_pad = _round_up(n_patches, TM)

    if N_pad != n_patches:
        patches = jnp.pad(patches, ((0, 0), (0, N_pad - n_patches), (0, 0)))
        pos_pb = jnp.pad(pos_pb, ((0, N_pad - n_patches), (0, 0)))
    if H_pad != hidden:
        w_mat = jnp.pad(w_mat, ((0, 0), (0, H_pad - hidden)))
        pos_pb = jnp.pad(pos_pb, ((0, 0), (0, H_pad - hidden)))

    grid = (B, N_pad // TM, H_pad // TH)

    out = pl.pallas_call(
        _embeddings_kernel,
        out_shape=jax.ShapeDtypeStruct((B, N_pad, H_pad), jnp.float32),
        grid_spec=pltpu.PrefetchScalarGridSpec(
            num_scalar_prefetch=0,
            grid=grid,
            in_specs=[
                pl.BlockSpec((1, TM, K), lambda b, n, h: (b, n, 0)),
                pl.BlockSpec((K, TH), lambda b, n, h: (0, h)),
                pl.BlockSpec((TM, TH), lambda b, n, h: (n, h)),
            ],
            out_specs=pl.BlockSpec((1, TM, TH), lambda b, n, h: (b, n, h)),
        ),
        compiler_params=pltpu.CompilerParams(
            dimension_semantics=("parallel", "parallel", "parallel"),
        ),
    )(patches, w_mat, pos_pb)

    emb = out[:, :n_patches, :hidden]
    features = None  # non-hybrid path
    return emb, features


if __name__ == "__main__":
    # Small shapes consistent with the module: img_size=16, patch=4, hidden=32.
    B, C, IMG, PATCH, HIDDEN = 2, 4, 16, 4, 32
    GH = GW = IMG // PATCH
    n_patches = GH * GW
    K = C * PATCH * PATCH

    key = jax.random.PRNGKey(0)
    kx, kw, kb, kp = jax.random.split(key, 4)

    x = jax.random.normal(kx, (B, C, IMG, IMG), dtype=jnp.float32)
    conv_w = jax.random.normal(kw, (HIDDEN, C, PATCH, PATCH), dtype=jnp.float32) * 0.02
    conv_b = jax.random.normal(kb, (HIDDEN,), dtype=jnp.float32) * 0.02
    # nn.Parameter(torch.zeros(...)) in __init__; randomized deterministically
    # here so the position-embedding add is exercised.
    pos_emb = jax.random.normal(kp, (1, n_patches, HIDDEN), dtype=jnp.float32) * 0.02

    emb, feats = embeddings_forward(x, conv_w, conv_b, pos_emb, (PATCH, PATCH))
    emb = jax.block_until_ready(emb)
    assert emb.shape == (B, n_patches, HIDDEN)
    assert feats is None

    # --- tight check: same bf16-rounded operands, f32 accumulation ---
    patches_f32 = (x.reshape(B, C, GH, PATCH, GW, PATCH)
                    .transpose(0, 2, 4, 1, 3, 5)
                    .reshape(B, n_patches, K))
    patches_bf = patches_f32.astype(jnp.bfloat16).astype(jnp.float32)
    w_bf = conv_w.astype(jnp.bfloat16).astype(jnp.float32).reshape(HIDDEN, K).T
    ref_bf = jnp.einsum("bnk,kh->bnh", patches_bf, w_bf,
                        precision=jax.lax.Precision.HIGHEST)
    ref_bf = ref_bf + conv_b[None, None, :] + pos_emb
    assert jnp.allclose(emb, ref_bf, atol=1e-3, rtol=1e-3)

    # --- loose check against the full-precision conv reference ---
    ref = jax.lax.conv_general_dilated(
        x, conv_w, window_strides=(PATCH, PATCH), padding="VALID",
        dimension_numbers=("NCHW", "OIHW", "NCHW"))
    ref = ref + conv_b.reshape(1, HIDDEN, 1, 1)
    ref = ref.reshape(B, HIDDEN, n_patches).transpose(0, 2, 1) + pos_emb
    assert jnp.allclose(emb, ref, atol=3e-2, rtol=3e-2)

    print("KERNEL_OK")
</pallas_src>

<mosaic_0001>
module attributes {stable_mosaic.version = 11 : i64} {
  func.func @_embeddings_kernel(%arg0: i32, %arg1: i32, %arg2: i32, %arg3: memref<1x16x64xbf16, #tpu.memory_space<vmem>>, %arg4: memref<64x128xbf16, #tpu.memory_space<vmem>>, %arg5: memref<16x128xf32, #tpu.memory_space<vmem>>, %arg6: memref<1x16x128xf32, #tpu.memory_space<vmem>>) attributes {dimension_semantics = [#tpu.dimension_semantics<parallel>, #tpu.dimension_semantics<parallel>, #tpu.dimension_semantics<parallel>], iteration_bounds = array<i64: 2, 1, 1>, scalar_prefetch = 0 : i64, scratch_operands = 0 : i64, tpu.core_type = #tpu.core_type<tc>, window_params = [{transform_indices = @transform_0, window_bounds = array<i64: 1, 16, 64>}, {transform_indices = @transform_1, window_bounds = array<i64: 64, 128>}, {transform_indices = @transform_2, window_bounds = array<i64: 16, 128>}, {transform_indices = @transform_3, window_bounds = array<i64: 1, 16, 128>}]} {
    %c0 = arith.constant 0 : index
    %c0_0 = arith.constant 0 : index
    %c0_1 = arith.constant 0 : index
    %0 = vector.load %arg3[%c0, %c0_0, %c0_1] : memref<1x16x64xbf16, #tpu.memory_space<vmem>>, vector<1x16x64xbf16>
    %1 = vector.shape_cast %0 : vector<1x16x64xbf16> to vector<16x64xbf16>
    %c0_2 = arith.constant 0 : index
    %c0_3 = arith.constant 0 : index
    %2 = vector.load %arg4[%c0_2, %c0_3] : memref<64x128xbf16, #tpu.memory_space<vmem>>, vector<64x128xbf16>
    %cst = arith.constant dense<0.000000e+00> : vector<16x128xf32>
    %3 = tpu.matmul %1, %2, %cst {dimension_numbers = #tpu.dot_dimension_numbers<[1], [0], [0], [1], [0, 0, 1, 1], [], []>} : vector<16x64xbf16>, vector<64x128xbf16>, vector<16x128xf32> -> vector<16x128xf32>
    %c0_4 = arith.constant 0 : index
    %c0_5 = arith.constant 0 : index
    %4 = vector.load %arg5[%c0_4, %c0_5] : memref<16x128xf32, #tpu.memory_space<vmem>>, vector<16x128xf32>
    %5 = arith.addf %3, %4 : vector<16x128xf32>
    %c0_6 = arith.constant 0 : index
    %c0_7 = arith.constant 0 : index
    %c0_8 = arith.constant 0 : index
    %6 = vector.load %arg6[%c0_6, %c0_7, %c0_8] : memref<1x16x128xf32, #tpu.memory_space<vmem>>, vector<1x16x128xf32>
    %7 = vector.shape_cast %6 : vector<1x16x128xf32> to vector<16x128xf32>
    %8 = vector.shape_cast %5 : vector<16x128xf32> to vector<1x16x128xf32>
    tpu.vector_store %arg6[%c0_6, %c0_7, %c0_8], %8 {strides = array<i32>} : memref<1x16x128xf32, #tpu.memory_space<vmem>>, vector<1x16x128xf32>,
    return
  }
  func.func @transform_0(%arg0: i32, %arg1: i32, %arg2: i32) -> (i32, i32, i32) {
    %c0_i32 = arith.constant 0 : i32
    %c0_i32_0 = arith.constant 0 : i32
    return %arg0, %arg1, %c0_i32 : i32, i32, i32
  }
  func.func @transform_1(%arg0: i32, %arg1: i32, %arg2: i32) -> (i32, i32) {
    %c0_i32 = arith.constant 0 : i32
    %c0_i32_0 = arith.constant 0 : i32
    return %c0_i32, %arg2 : i32, i32
  }
  func.func @transform_2(%arg0: i32, %arg1: i32, %arg2: i32) -> (i32, i32) {
    %c0_i32 = arith.constant 0 : i32
    return %arg1, %arg2 : i32, i32
  }
  func.func @transform_3(%arg0: i32, %arg1: i32, %arg2: i32) -> (i32, i32, i32) {
    %c0_i32 = arith.constant 0 : i32
    return %arg0, %arg1, %arg2 : i32, i32, i32
  }
}

</mosaic_0001>

<llo_original>
// kernel: tpu_custom_call.1
$region0: #{tpu_custom_call.1}
  #allocation0 [shape = 'u32[]', space=smem, size = 0x4, offset = 0x4, fixed_abs, tag = 'smem constant byte address 0x4 - core index']
  #allocation1 [shape = 'u32[144,128]{1,0:T(1,128)}', space=vmem, size = 0x12000, scoped, tag = 'internal scratch']
  %s0 = inlined_call_operand.hbm [shape: bf16[2,16,64], index: 0, kind: input, shape index: {}]
  %s1 = inlined_call_operand.hbm [shape: bf16[64,128], index: 1, kind: input, shape index: {}]
  %s2 = inlined_call_operand.hbm [shape: f32[16,128], index: 2, kind: input, shape index: {}]
  %s3 = inlined_call_operand.hbm [shape: f32[2,16,128], index: 3, kind: output, shape index: {}]
  %s4 = sld [smem:[#allocation0]]
  $region57: #{tpu_custom_call.1} parent=0
    _
  %s6 = ssub.s32 1, %s4
  %s7 = scalar_select 0, %s6, %s4
  $region1: #{tpu_custom_call.1} parent=0
    #allocation2 [shape = 'u8[8192]{0}', space=vmem, size = 0x2000, scoped, tag = 'input window, operand 0']
    #allocation3 [shape = 's32[2]{0}', space=sflag, size = 0x8, scoped, tag = 'scoped memory for tpu_custom_call.1']
    #allocation4 [shape = 's32[2]{0}', space=sflag, size = 0x8, scoped, tag = 'scoped memory for tpu_custom_call.1']
    #allocation5 [shape = 'u8[16384]{0}', space=vmem, size = 0x4000, scoped, tag = 'input window, operand 1, single buffered']
    #allocation6 [shape = 's32[1]{0}', space=sflag, size = 0x4, scoped, tag = 'scoped memory for tpu_custom_call.1']
    #allocation7 [shape = 'u8[8192]{0}', space=vmem, size = 0x2000, scoped, tag = 'input window, operand 2, single buffered']
    #allocation8 [shape = 'u8[16384]{0}', space=vmem, size = 0x4000, scoped, tag = 'output window, operand 0']
    %8 = vsyncpa [#allocation3], 0
    %s9 = scalar_lea.sflag [#allocation3], 1
    %10 = vsyncpa %s9, 0
    %11 = vsyncpa [#allocation6], 0
    %12 = vsyncpa [#allocation4], 0
    %s13 = scalar_lea.sflag [#allocation4], 1
    %14 = vsyncpa %s13, 0
    loop: start=0, step=1, limit=4
    $region2: #{tpu_custom_call.1} parent=1 // loop_pre_header
      _
    $region3: #{tpu_custom_call.1} parent=1 // loop_header
      %s16 = sphi 0, %s20
      %p17 = scmp.ge.s32.totalorder %s16, 4
      %s23 = sphi 0, %s42
      %s24 = sphi 0, %s38
      %s25 = sphi 0, %s34
      %s26 = sphi 0, %s23
      %s27 = sphi 0, %s24
      %s28 = sphi 0, %s25
      %s29 = sphi 0, %s26
      %s30 = sphi 0, %s27
      %s31 = sphi 0, %s28
      %s47 = sphi 0, %s49
      %s50 = sphi 0, %s47
      %s51 = sphi 0, %s50
      %s67 = sphi 0, %s51
      %s73 = sphi 0, %s75
      %s76 = sphi 0, %s73
      %s77 = sphi 0, %s76
      %s93 = sphi 0, %s77
      %s101 = sphi 0, %s103
      %s104 = sphi 0, %s101
      %s105 = sphi 0, %s104
      %s121 = sphi 0, %s105
      %s131 = sphi 0, %s133
      %s134 = sphi 0, %s131
      %s135 = sphi 0, %s134
      %s151 = sphi 0, %s135
    $region4: #{tpu_custom_call.1} parent=1 // loop_header_branch
      %19 = sbr.rel (%p17) target = $region8
    $region5: #{tpu_custom_call.1} parent=1 // loop_body
      %s21 = ssub.s32 %s16, 1
      %s22 = ssub.s32 %s16, 2
      %s32 = sadd.s32 1, %s25
      %p33 = scmp.ge.s32.totalorder %s32, 1
      %s34 = scalar_select %p33, 0, %s32
      %s35 = sadd.s32 1, %s24
      %s36 = scalar_select %p33, %s35, %s24
      %p37 = scmp.ge.s32.totalorder %s36, 1
      %s38 = scalar_select %p37, 0, %s36
      %s39 = sadd.s32 1, %s23
      %s40 = scalar_select %p37, %s39, %s23
      %p41 = scmp.ge.s32.totalorder %s40, 2
      %s42 = scalar_select %p41, 0, %s40
      %s43 = ssub.s32 %s23, %s42
      %s44 = ssub.s32 %s24, %s38
      %s45 = sor.u32 %s43, %s44
      %p46 = scmp.eq.s32.totalorder %s45, 0
      %s48 = sadd.s32 %s47, 1
      %s49 = scalar_select %p46, %s47, %s48
      %p52 = pneg %p46
      %p53 = scmp.eq.s32.totalorder %s16, 1
      %p54 = por %p52, %p53
      %p55 = scmp.ne.s32.totalorder %s47, %s50
      %p56 = scmp.eq.s32.totalorder %s16, 0
      %p57 = por %p55, %p56
      %p58 = scmp.ne.s32.totalorder %s47, %s50
      %p59 = scmp.eq.s32.totalorder %s21, 1
      %p60 = por %p58, %p59
      %p61 = scmp.ne.s32.totalorder %s50, %s51
      %p62 = scmp.eq.s32.totalorder %s21, 0
      %p63 = por %p61, %p62
      %p64 = scmp.ne.s32.totalorder %s50, %s51
      %p65 = scmp.eq.s32.totalorder %s22, 1
      %p66 = por %p64, %p65
      %p68 = scmp.ne.s32.totalorder %s51, %s67
      %p69 = scmp.eq.s32.totalorder %s22, 0
      %p70 = por %p68, %p69
      %s71 = ssub.s32 %s25, %s34
      %p72 = scmp.eq.s32.totalorder %s71, 0
      %s74 = sadd.s32 %s73, 1
      %s75 = scalar_select %p72, %s73, %s74
      %p78 = pneg %p72
      %p79 = scmp.eq.s32.totalorder %s16, 1
      %p80 = por %p78, %p79
      %p81 = scmp.ne.s32.totalorder %s73, %s76
      %p82 = scmp.eq.s32.totalorder %s16, 0
      %p83 = por %p81, %p82
      %p84 = scmp.ne.s32.totalorder %s73, %s76
      %p85 = scmp.eq.s32.totalorder %s21, 1
      %p86 = por %p84, %p85
      %p87 = scmp.ne.s32.totalorder %s76, %s77
      %p88 = scmp.eq.s32.totalorder %s21, 0
      %p89 = por %p87, %p88
      %p90 = scmp.ne.s32.totalorder %s76, %s77
      %p91 = scmp.eq.s32.totalorder %s22, 1
      %p92 = por %p90, %p91
      %p94 = scmp.ne.s32.totalorder %s77, %s93
      %p95 = scmp.eq.s32.totalorder %s22, 0
      %p96 = por %p94, %p95
      %s97 = ssub.s32 %s24, %s38
      %s98 = ssub.s32 %s25, %s34
      %s99 = sor.u32 %s97, %s98
      %p100 = scmp.eq.s32.totalorder %s99, 0
      %s102 = sadd.s32 %s101, 1
      %s103 = scalar_select %p100, %s101, %s102
      %p106 = pneg %p100
      %p107 = scmp.eq.s32.totalorder %s16, 1
      %p108 = por %p106, %p107
      %p109 = scmp.ne.s32.totalorder %s101, %s104
      %p110 = scmp.eq.s32.totalorder %s16, 0
      %p111 = por %p109, %p110
      %p112 = scmp.ne.s32.totalorder %s101, %s104
      %p113 = scmp.eq.s32.totalorder %s21, 1
      %p114 = por %p112, %p113
      %p115 = scmp.ne.s32.totalorder %s104, %s105
      %p116 = scmp.eq.s32.totalorder %s21, 0
      %p117 = por %p115, %p116
      %p118 = scmp.ne.s32.totalorder %s104, %s105
      %p119 = scmp.eq.s32.totalorder %s22, 1
      %p120 = por %p118, %p119
      %p122 = scmp.ne.s32.totalorder %s105, %s121
      %p123 = scmp.eq.s32.totalorder %s22, 0
      %p124 = por %p122, %p123
      %s125 = ssub.s32 %s23, %s42
      %s126 = ssub.s32 %s24, %s38
      %s127 = sor.u32 %s125, %s126
      %s128 = ssub.s32 %s25, %s34
      %s129 = sor.u32 %s127, %s128
      %p130 = scmp.eq.s32.totalorder %s129, 0
      %s132 = sadd.s32 %s131, 1
      %s133 = scalar_select %p130, %s131, %s132
      %p136 = pneg %p130
      %p137 = scmp.eq.s32.totalorder %s16, 1
      %p138 = por %p136, %p137
      %p139 = scmp.ne.s32.totalorder %s131, %s134
      %p140 = scmp.eq.s32.totalorder %s16, 0
      %p141 = por %p139, %p140
      %p142 = scmp.ne.s32.totalorder %s131, %s134
      %p143 = scmp.eq.s32.totalorder %s21, 1
      %p144 = por %p142, %p143
      %p145 = scmp.ne.s32.totalorder %s134, %s135
      %p146 = scmp.eq.s32.totalorder %s21, 0
      %p147 = por %p145, %p146
      %p148 = scmp.ne.s32.totalorder %s134, %s135
      %p149 = scmp.eq.s32.totalorder %s22, 1
      %p150 = por %p148, %p149
      %p152 = scmp.ne.s32.totalorder %s135, %s151
      %p153 = scmp.eq.s32.totalorder %s22, 0
      %p154 = por %p152, %p153
      %p155 = scmp.le.s32.totalorder 1, %s16
      %p156 = scmp.lt.s32.totalorder %s16, 3
      %p157 = pnand %p155, %p156
      %p158 = pneg %p157
      // Predicated region
      $region9: #{tpu_custom_call.1} parent=5 // pred_check
        _
      $region10: #{tpu_custom_call.1} parent=5 // pred_check_branch
        %160 = sbr.rel (%p157) target = $region12
      $region11: #{tpu_custom_call.1} parent=5 // pred_region
        %s161 = ssub.s32 %s16, 1
        // Predicated region
        $region13: #{tpu_custom_call.1} parent=11 // pred_check
          %p162 = pneg %p89
        $region14: #{tpu_custom_call.1} parent=11 // pred_check_branch
          %164 = sbr.rel (%p162) target = $region16
        $region15: #{tpu_custom_call.1} parent=11 // pred_region
          %s166 = ssub.s32 512, 512
          %167 = vsyncadd [#allocation6], %s166
          %s168 = smul.addr %s28, 64
          %s169 = scalar_lea.hbm %s1, %s168
          %s170 = sshll.u32 [#allocation5], 4
          %s171 = int_to_ptr.vmem [resolvable:$true] %s170
          %176 = dma.hbm_to_vmem [thread:$0]  %s169, 512, %s171, [#allocation6], 64, 64, 4
        $region16: #{tpu_custom_call.1} parent=11 // pred_fallthru
          _
        // Predicated region
        $region17: #{tpu_custom_call.1} parent=11 // pred_check
          %p177 = pneg %p117
        $region18: #{tpu_custom_call.1} parent=11 // pred_check_branch
          %179 = sbr.rel (%p177) target = $region20
        $region19: #{tpu_custom_call.1} parent=11 // pred_region
          %s180 = smul.u32 2, %s27
          %s182 = ssub.s32 256, 256
          %183 = vsyncadd [#allocation6], %s182
          %s184 = sadd.s32 %s28, %s180
          %s185 = smul.addr %s184, 128
          %s186 = scalar_lea.hbm %s2, %s185
          %s187 = sshll.u32 [#allocation7], 4
          %s188 = int_to_ptr.vmem [resolvable:$true] %s187
          %193 = dma.hbm_to_vmem [thread:$0]  %s186, 256, %s188, [#allocation6], 128, 128, 8
        $region20: #{tpu_custom_call.1} parent=11 // pred_fallthru
          _
      $region12: #{tpu_custom_call.1} parent=5 // pred_fallthru
        _
      %p194 = scmp.lt.s32.totalorder %s16, 2
      // Predicated region
      $region21: #{tpu_custom_call.1} parent=5 // pred_check
        %p195 = pneg %p194
      $region22: #{tpu_custom_call.1} parent=5 // pred_check_branch
        %197 = sbr.rel (%p195) target = $region24
      $region23: #{tpu_custom_call.1} parent=5 // pred_region
        // Predicated region
        $region25: #{tpu_custom_call.1} parent=23 // pred_check
          %p198 = pneg %p57
        $region26: #{tpu_custom_call.1} parent=23 // pred_check_branch
          %200 = sbr.rel (%p198) target = $region28
        $region27: #{tpu_custom_call.1} parent=23 // pred_region
          %s201 = sand.u32 %s47, 1
          %s202 = scalar_lea.sflag [#allocation3], %s201
          %s203 = sand.u32 %s47, 1
          %s204 = smul.addr %s203, 8
          %s205 = scalar_lea.vmem [#allocation2], %s204
          %s206 = smul.u32 2, %s24
          %s208 = ssub.s32 128, 128
          %209 = vsyncadd %s202, %s208
          %s210 = smul.addr %s23, 2
          %s211 = sadd.s32 %s206, %s210
          %s212 = smul.addr %s211, 64
          %s213 = scalar_lea.hbm %s0, %s212
          %s214 = sshll.u32 %s205, 4
          %s215 = int_to_ptr.vmem [resolvable:$true] %s214
          %220 = dma.hbm_to_vmem [thread:$0]  %s213, 128, %s215, %s202, 64, 64, 4
        $region28: #{tpu_custom_call.1} parent=23 // pred_fallthru
          _
      $region24: #{tpu_custom_call.1} parent=5 // pred_fallthru
        _
      %p221 = scmp.le.s32.totalorder 1, %s16
      %p222 = scmp.lt.s32.totalorder %s16, 3
      %p223 = pnand %p221, %p222
      %p224 = pneg %p223
      // Predicated region
      $region29: #{tpu_custom_call.1} parent=5 // pred_check
        _
      $region30: #{tpu_custom_call.1} parent=5 // pred_check_branch
        %226 = sbr.rel (%p223) target = $region32
      $region31: #{tpu_custom_call.1} parent=5 // pred_region
        %s227 = ssub.s32 %s16, 1
        %s228 = sand.u32 %s50, 1
        %s229 = scalar_lea.sflag [#allocation3], %s228
        %s230 = sand.u32 %s50, 1
        %s231 = smul.addr %s230, 8
        %s232 = scalar_lea.vmem [#allocation2], %s231
        // Predicated region
        $region33: #{tpu_custom_call.1} parent=31 // pred_check
          %p233 = pneg %p63
        $region34: #{tpu_custom_call.1} parent=31 // pred_check_branch
          %235 = sbr.rel (%p233) target = $region36
        $region35: #{tpu_custom_call.1} parent=31 // pred_region
          %236 = dma.done %s229, 128
        $region36: #{tpu_custom_call.1} parent=31 // pred_fallthru
          _
        // Predicated region
        $region37: #{tpu_custom_call.1} parent=31 // pred_check
          %p237 = pneg %p89
        $region38: #{tpu_custom_call.1} parent=31 // pred_check_branch
          %239 = sbr.rel (%p237) target = $region40
        $region39: #{tpu_custom_call.1} parent=31 // pred_region
          %240 = dma.done [#allocation6], 512
        $region40: #{tpu_custom_call.1} parent=31 // pred_fallthru
          _
        // Predicated region
        $region41: #{tpu_custom_call.1} parent=31 // pred_check
          %p241 = pneg %p117
        $region42: #{tpu_custom_call.1} parent=31 // pred_check_branch
          %243 = sbr.rel (%p241) target = $region44
        $region43: #{tpu_custom_call.1} parent=31 // pred_region
          %244 = dma.done [#allocation6], 256
        $region44: #{tpu_custom_call.1} parent=31 // pred_fallthru
          _
        %s245 = sand.u32 %s50, 1
        %s246 = scalar_lea.sflag [#allocation3], %s245
        %s247 = sand.u32 %s50, 1
        %s248 = smul.addr %s247, 8
        %s249 = scalar_lea.vmem [#allocation2], %s248
        %p250 = pneg %p63
        %p251 = pneg %p60
        %p252 = pneg %p89
        %p253 = pneg %p86
        %p254 = pneg %p117
        %p255 = pneg %p114
        %p256 = pneg %p147
        %p257 = pneg %p144
        %s258 = sand.u32 %s134, 1
        %s259 = scalar_lea.sflag [#allocation4], %s258
        %s260 = sand.u32 %s134, 1
        %s261 = smul.addr %s260, 16
        %s262 = scalar_lea.vmem [#allocation8], %s261
        %s263 = smul.u32 2, %s27
        %s264 = smul.u32 2, %s27
        %s265 = smul.u32 2, %s27
        %v267 = vld [vmem:[%s232] sm:$0xf]
        %v268 = vld [vmem:[%s232 + $0x4] sm:$0xf]
        %v269 = vld [vmem:[#allocation5] sm:$0xf]
        %v270 = vld [vmem:[#allocation5 + $0x4] sm:$0xf]
        %v271 = vld [vmem:[#allocation5 + $0x8] sm:$0xf]
        %v272 = vld [vmem:[#allocation5 + $0xc] sm:$0xf]
        %v273 = vld [vmem:[#allocation5 + $0x10] sm:$0xf]
        %v274 = vld [vmem:[#allocation5 + $0x14] sm:$0xf]
        %v275 = vld [vmem:[#allocation5 + $0x18] sm:$0xf]
        %v276 = vld [vmem:[#allocation5 + $0x1c] sm:$0xf]
        %v277 = vld [vmem:[#allocation7] sm:$0xff]
        %v278 = vld [vmem:[#allocation7 + $0x8] sm:$0xff]
        %v281 = vunpack.c.l.b16 %v267
        %v282 = vunpack.c.l.b16 %v268
        %v283 = vpack.c.b16 %v282, %v281
        %v292 = vunpack.c.l.b16 %v269
        %v293 = vunpack.c.l.b16 %v270
        %v294 = vunpack.c.l.b16 %v271
        %v295 = vunpack.c.l.b16 %v272
        %v296 = vunpack.c.l.b16 %v273
        %v297 = vunpack.c.l.b16 %v274
        %v298 = vunpack.c.l.b16 %v275
        %v299 = vunpack.c.l.b16 %v276
        %v300 = vpack.c.b16 %v293, %v292
        %v301 = vpack.c.b16 %v295, %v294
        %v302 = vpack.c.b16 %v297, %v296
        %v303 = vpack.c.b16 %v299, %v298
        %vm308 = vcmask 523264
        %v310 = vsel %vm308, %v283, 0
        %312 = vmatprep.subr.bf16.mxu0 0
        %313 = vmatpush1.bf16.msra.mxu0 %v300
        %314 = vmatprep.subr.bf16.mxu0 0
        %315 = vmatpush1.bf16.msra.mxu0 %v301
        %316 = vmatprep.subr.bf16.mxu0 0
        %317 = vmatpush1.bf16.msra.mxu0 %v302
        %318 = vmatprep.subr.bf16.mxu0 0
        %319 = vmatpush1.bf16.msra.mxu0 %v303
        %320 = vmatprep.subr.bf16.mxu0 0
        %321 = vmatpush1.bf16.msra.mxu0 0
        %322 = vmatprep.subr.bf16.mxu0 0
        %323 = vmatpush1.bf16.msra.mxu0 0
        %324 = vmatprep.subr.bf16.mxu0 0
        %325 = vmatpush1.bf16.msra.mxu0 0
        %326 = vmatprep.subr.bf16.mxu0 0
        %327 = vmatpush1.bf16.msra.mxu0 0
        %328 = vmatprep.subr.bf16.mxu0 0
        %329 = vmatpush1.bf16.msra.mxu0 0
        %330 = vmatprep.subr.bf16.mxu0 0
        %331 = vmatpush1.bf16.msra.mxu0 0
        %332 = vmatprep.subr.bf16.mxu0 0
        %333 = vmatpush1.bf16.msra.mxu0 0
        %334 = vmatprep.subr.bf16.mxu0 0
        %335 = vmatpush1.bf16.msra.mxu0 0
        %336 = vmatprep.subr.bf16.mxu0 0
        %337 = vmatpush1.bf16.msra.mxu0 0
        %338 = vmatprep.subr.bf16.mxu0 0
        %339 = vmatpush1.bf16.msra.mxu0 0
        %340 = vmatprep.subr.bf16.mxu0 0
        %341 = vmatpush1.bf16.msra.mxu0 0
        %342 = vmatprep.subr.bf16.mxu0 0
        %343 = vmatpush1.bf16.msra.mxu0 0
        %344 = vmatprep.mubr.bf16.mxu0 0
        %345 = vmatmul.mubr.bf16.gmra.mrb[0].mxu0 %v310
        %v346 = vpop.f32.mrb[0].mxu0
        %v347 = vadd.f32 %v277, %v346
        %v348 = vpop.f32.mrb[0].mxu0
        %v349 = vpop.f32.mrb[0].mxu0
        %v350 = vadd.f32 %v278, %v349
        %v351 = vpop.f32.mrb[0].mxu0
        %352 = vdwg.mxu0
        %353 = vst [vmem:[%s262] sm:$0xff] %v347
        %354 = vst [vmem:[%s262 + $0x8] sm:$0xff] %v350
        %s355 = sand.u32 %s134, 1
        %s356 = scalar_lea.sflag [#allocation4], %s355
        %s357 = sand.u32 %s134, 1
        %s358 = smul.addr %s357, 16
        %s359 = scalar_lea.vmem [#allocation8], %s358
        // Predicated region
        $region45: #{tpu_custom_call.1} parent=31 // pred_check
          %p360 = pneg %p144
        $region46: #{tpu_custom_call.1} parent=31 // pred_check_branch
          %362 = sbr.rel (%p360) target = $region48
        $region47: #{tpu_custom_call.1} parent=31 // pred_region
          %s363 = smul.u32 2, %s27
          %s365 = ssub.s32 256, 256
          %366 = vsyncadd %s356, %s365
          %s367 = sadd.s32 %s28, %s363
          %s368 = smul.addr %s26, 2
          %s369 = sadd.s32 %s367, %s368
          %s370 = smul.addr %s369, 128
          %s371 = scalar_lea.hbm %s3, %s370
          %s372 = sshll.u32 %s359, 4
          %s373 = int_to_ptr.vmem [resolvable:$true] %s372
          %378 = dma.vmem_to_hbm [thread:$0]  %s373, 256, %s371, %s356, 128, 128, 8
        $region48: #{tpu_custom_call.1} parent=31 // pred_fallthru
          _
      $region32: #{tpu_custom_call.1} parent=5 // pred_fallthru
        _
      %p379 = scmp.le.s32.totalorder 2, %s16
      // Predicated region
      $region49: #{tpu_custom_call.1} parent=5 // pred_check
        %p380 = pneg %p379
      $region50: #{tpu_custom_call.1} parent=5 // pred_check_branch
        %382 = sbr.rel (%p380) target = $region52
      $region51: #{tpu_custom_call.1} parent=5 // pred_region
        %s383 = ssub.s32 %s16, 2
        // Predicated region
        $region53: #{tpu_custom_call.1} parent=51 // pred_check
          %p384 = pneg %p150
        $region54: #{tpu_custom_call.1} parent=51 // pred_check_branch
          %386 = sbr.rel (%p384) target = $region56
        $region55: #{tpu_custom_call.1} parent=51 // pred_region
          %s387 = sand.u32 %s135, 1
          %s388 = scalar_lea.sflag [#allocation4], %s387
          %s389 = sand.u32 %s135, 1
          %s390 = smul.addr %s389, 16
          %s391 = scalar_lea.vmem [#allocation8], %s390
          %392 = dma.done %s388, 256
        $region56: #{tpu_custom_call.1} parent=51 // pred_fallthru
          _
      $region52: #{tpu_custom_call.1} parent=5 // pred_fallthru
        _
    $region6: #{tpu_custom_call.1} parent=1 // loop_footer
      %s20 = sadd.s32 1, %s16
    $region7: #{tpu_custom_call.1} parent=1 // loop_footer_branch
      %15 = sbr.rel target = $region3
    $region8: #{tpu_custom_call.1} parent=1 // loop_exit
      _
    %393 = vsyncpa [#allocation3], 1
    %s394 = scalar_lea.sflag [#allocation3], 1
    %395 = vsyncpa %s394, 1
    %396 = vsyncpa [#allocation6], 1
    %397 = vsyncpa [#allocation4], 1
    %s398 = scalar_lea.sflag [#allocation4], 1
    %399 = vsyncpa %s398, 1

</llo_original>
